<compile_context>
chip_gen: v5e
topology: v5e:2x2
jax: 0.10.0
libtpu: 0.0.40
codegen_flags: <defaults>
</compile_context>

<pallas_src>
import functools

import jax
import jax.numpy as jnp
from jax.experimental import pallas as pl
from jax.experimental.pallas import tpu as pltpu

_LANE = 128
_LANE_CHOICES = (4096, 2048, 1024, 512, 256, 128)
_TILE_BYTES_SMALL = 4 * 1024 * 1024     # per-block target (small/medium arrays)
_TILE_BYTES_LARGE = 8 * 1024 * 1024     # per-block target (large arrays)
_LARGE_ARRAY_BYTES = 64 * 1024 * 1024
_MIN_GRID_STEPS = 4                     # >= 2 row tiles per TensorCore (v7x)
_VMEM_LIMIT_BYTES = 48 * 1024 * 1024    # 4x8 MiB pipeline + slack; v7x-safe


def _identity(v):
    return v


def _round_up(x, m):
    return ((x + m - 1) // m) * m


def _sublane_pack(dtype):
    # Physical sublane packing: 8 rows for 4-byte, 16 for 2-byte, 32 for 1-byte.
    return max(8, 32 // jnp.dtype(dtype).itemsize)


def _rezero_kernel(fn, g_ref, x_ref, o_ref):
    # g_ref: (1,) float32 in SMEM.  x_ref / o_ref: (tile_r, lane_w) VMEM tiles.
    y = fn(x_ref[...])
    # NOTE: g is rounded to the tile dtype before the multiply to keep bf16
    # tiles in bf16 (differs from an f32-parameter multiply by <= 1 bf16 ulp).
    o_ref[...] = (y * g_ref[0].astype(y.dtype)).astype(o_ref.dtype)


def _plan(n, dtype):
    """Pick (lane_w, n_prefix, rows, tile_r) for a flat length-n array."""
    itemsize = jnp.dtype(dtype).itemsize
    pack = _sublane_pack(dtype)

    # Lane width: widest multiple of 128 that divides n (zero-copy reshape)
    # and still yields at least `pack` rows.
    lane_w = None
    for w in _LANE_CHOICES:
        if n % w == 0 and n // w >= pack:
            lane_w = w
            break
    if lane_w is None and n % _LANE == 0:
        lane_w = _LANE          # small but lane-aligned: maximize row count
    if lane_w is not None:
        n_prefix = n
    else:
        # Misaligned n: kernel covers the lane-aligned prefix, tail in jnp.
        for w in _LANE_CHOICES:
            if n >= pack * w:
                lane_w = w
                break
        else:
            lane_w = _LANE
        n_prefix = (n // lane_w) * lane_w
        if n_prefix == 0:
            return None         # too small for a kernel launch

    rows = n_prefix // lane_w

    target = _TILE_BYTES_LARGE if n * itemsize >= _LARGE_ARRAY_BYTES else _TILE_BYTES_SMALL
    max_tile_r = max(pack, (target // (lane_w * itemsize)) // pack * pack)
    # Keep >= _MIN_GRID_STEPS grid steps so both v7x TensorCores get work.
    cap = _round_up(max(1, pl.cdiv(rows, _MIN_GRID_STEPS)), pack)
    tile_r = max(pack, min(max_tile_r, cap))
    tile_r = min(tile_r, _round_up(rows, pack))
    return lane_w, n_prefix, rows, tile_r


def _rezero_pallas_2d(x2d, g, fn, tile_r, lane_w):
    rows = x2d.shape[0]
    return pl.pallas_call(
        functools.partial(_rezero_kernel, fn),
        out_shape=jax.ShapeDtypeStruct(x2d.shape, x2d.dtype),
        grid_spec=pltpu.PrefetchScalarGridSpec(
            num_scalar_prefetch=0,
            grid=(pl.cdiv(rows, tile_r),),
            in_specs=[
                # rezero scale parameter -> whole array in SMEM
                pl.BlockSpec(memory_space=pltpu.MemorySpace.SMEM),
                # data slab -> (tile_r, lane_w) row tiles, auto double-buffered
                pl.BlockSpec((tile_r, lane_w), lambda i: (i, 0)),
            ],
            out_specs=pl.BlockSpec((tile_r, lane_w), lambda i: (i, 0)),
        ),
        compiler_params=pltpu.CompilerParams(
            dimension_semantics=("parallel",),
            vmem_limit_bytes=_VMEM_LIMIT_BYTES,
        ),
    )(g, x2d)


def _rezero_impl(x, g, fn):
    orig_shape, orig_dtype = x.shape, x.dtype
    n = x.size
    g = jnp.asarray(g, dtype=jnp.float32).reshape((1,))
    plan = _plan(n, orig_dtype)

    if plan is None:
        # Tiny array: not worth a kernel launch.
        return (fn(x) * g[0].astype(orig_dtype)).astype(orig_dtype)

    lane_w, n_prefix, rows, tile_r = plan
    flat = x.reshape(-1)

    if n_prefix == n:
        out2d = _rezero_pallas_2d(flat.reshape(rows, lane_w), g, fn, tile_r, lane_w)
        return out2d.reshape(orig_shape)

    # Misaligned size: Pallas over the aligned prefix (bitcast reshape, no
    # padded copy), ragged tail (< lane_w elements) in plain jnp.
    out2d = _rezero_pallas_2d(flat[:n_prefix].reshape(rows, lane_w), g, fn,
                              tile_r, lane_w)
    tail = flat[n_prefix:]
    tail_out = (fn(tail) * g[0].astype(tail.dtype)).astype(orig_dtype)
    # TODO(synk): the concatenate still rewrites the prefix once; fully fusing
    # the tail would need a masked 1D output BlockSpec.
    return jnp.concatenate([out2d.reshape(-1), tail_out]).reshape(orig_shape)


@functools.partial(jax.jit, static_argnames=("fn",))
def rezero(x, g, fn=_identity):
    """y = fn(x) * g, with an elementwise fn fused with the rezero scale.

    x  : arbitrary-shape float array (NCHW in the test below)
    g  : shape-(1,) parameter (torch.zeros(1) equivalent)
    fn : STRICTLY elementwise, traceable function. Non-elementwise wrapped
         modules must be evaluated in plain JAX before calling this.
    """
    return _rezero_impl(x, g, fn)


if __name__ == "__main__":
    key = jax.random.PRNGKey(0)

    # Small NCHW input, consistent with diffsr_blocks' use of Rezero on
    # (N, C, H, W) feature maps.
    N, C, H, W = 2, 4, 16, 16
    x = jax.random.normal(key, (N, C, H, W), dtype=jnp.float32)

    # Module init: self.g = nn.Parameter(torch.zeros(1))
    g_param = jnp.zeros((1,), dtype=jnp.float32)

    # Representative elementwise wrapped fn (tanh-approx GELU: EUP-friendly).
    fn = jax.nn.gelu

    # --- run with the module's true init (g = 0) ---
    y = jax.block_until_ready(rezero(x, g_param, fn=fn))
    ref = fn(x) * g_param[0]
    assert y.shape == x.shape and y.dtype == x.dtype
    assert jnp.allclose(y, ref, atol=1e-6), "mismatch at g=0"

    # --- numerical sanity check with a non-zero g ---
    g_test = jnp.asarray([0.37], dtype=jnp.float32)
    y2 = jax.block_until_ready(rezero(x, g_test, fn=fn))
    ref2 = fn(x) * g_test[0]
    assert jnp.allclose(y2, ref2, atol=1e-5, rtol=1e-5), "mismatch at g=0.37"

    # --- bf16 path (packed 16-row tiles, in-kernel g cast keeps bf16) ---
    xb = x.astype(jnp.bfloat16)
    y3 = jax.block_until_ready(rezero(xb, g_test, fn=fn))
    ref3 = (fn(xb) * g_test[0].astype(jnp.bfloat16)).astype(jnp.bfloat16)
    assert y3.dtype == jnp.bfloat16
    assert jnp.allclose(y3.astype(jnp.float32), ref3.astype(jnp.float32),
                        atol=2e-2, rtol=2e-2), "mismatch at bf16"

    # --- misaligned size path (ragged in-kernel block + jnp tail, no pad) ---
    x_odd = jax.random.normal(key, (2, 3, 17, 17), dtype=jnp.float32)
    y4 = jax.block_until_ready(rezero(x_odd, g_test, fn=fn))
    ref4 = fn(x_odd) * g_test[0]
    assert y4.shape == x_odd.shape
    assert jnp.allclose(y4, ref4, atol=1e-5, rtol=1e-5), "mismatch misaligned"

    print("KERNEL_OK")
</pallas_src>

<mosaic_0001>
module attributes {stable_mosaic.version = 11 : i64} {
  func.func @_rezero_kernel(%arg0: i32, %arg1: memref<1xf32, #tpu.memory_space<smem>>, %arg2: memref<8x256xf32, #tpu.memory_space<vmem>>, %arg3: memref<8x256xf32, #tpu.memory_space<vmem>>) attributes {dimension_semantics = [#tpu.dimension_semantics<parallel>], iteration_bounds = array<i64: 1>, scalar_prefetch = 0 : i64, scratch_operands = 0 : i64, tpu.core_type = #tpu.core_type<tc>, window_params = [{transform_indices = @transform_0, window_bounds = array<i64: 1>}, {transform_indices = @transform_1, window_bounds = array<i64: 8, 256>}, {transform_indices = @transform_2, window_bounds = array<i64: 8, 256>}]} {
    %c0 = arith.constant 0 : index
    %c0_0 = arith.constant 0 : index
    %0 = vector.load %arg2[%c0, %c0_0] : memref<8x256xf32, #tpu.memory_space<vmem>>, vector<8x256xf32>
    %1 = arith.mulf %0, %0 : vector<8x256xf32>
    %2 = arith.mulf %0, %1 : vector<8x256xf32>
    %cst = arith.constant 4.471500e-02 : f32
    %3 = vector.broadcast %cst : f32 to vector<8x256xf32>
    %4 = arith.mulf %3, %2 : vector<8x256xf32>
    %5 = arith.addf %0, %4 : vector<8x256xf32>
    %cst_1 = arith.constant 0.797884583 : f32
    %6 = vector.broadcast %cst_1 : f32 to vector<8x256xf32>
    %7 = arith.mulf %6, %5 : vector<8x256xf32>
    %8 = math.tanh %7 : vector<8x256xf32>
    %cst_2 = arith.constant 1.000000e+00 : f32
    %9 = vector.broadcast %cst_2 : f32 to vector<8x256xf32>
    %10 = arith.addf %9, %8 : vector<8x256xf32>
    %cst_3 = arith.constant 5.000000e-01 : f32
    %11 = vector.broadcast %cst_3 : f32 to vector<8x256xf32>
    %12 = arith.mulf %11, %10 : vector<8x256xf32>
    %13 = arith.mulf %0, %12 : vector<8x256xf32>
    %c0_4 = arith.constant 0 : index
    %14 = memref.load %arg1[%c0_4] : memref<1xf32, #tpu.memory_space<smem>>
    %15 = vector.broadcast %14 : f32 to vector<8x256xf32>
    %16 = arith.mulf %13, %15 : vector<8x256xf32>
    %c0_5 = arith.constant 0 : index
    %c0_6 = arith.constant 0 : index
    %17 = vector.load %arg3[%c0_5, %c0_6] : memref<8x256xf32, #tpu.memory_space<vmem>>, vector<8x256xf32>
    tpu.vector_store %arg3[%c0_5, %c0_6], %16 {strides = array<i32>} : memref<8x256xf32, #tpu.memory_space<vmem>>, vector<8x256xf32>,
    return
  }
  func.func @transform_0(%arg0: i32) -> i32 {
    %c0_i32 = arith.constant 0 : i32
    %c0_i32_0 = arith.constant 0 : i32
    return %c0_i32 : i32
  }
  func.func @transform_1(%arg0: i32) -> (i32, i32) {
    %c0_i32 = arith.constant 0 : i32
    %c0_i32_0 = arith.constant 0 : i32
    return %arg0, %c0_i32 : i32, i32
  }
  func.func @transform_2(%arg0: i32) -> (i32, i32) {
    %c0_i32 = arith.constant 0 : i32
    %c0_i32_0 = arith.constant 0 : i32
    return %arg0, %c0_i32 : i32, i32
  }
}

</mosaic_0001>

<llo_original>
// kernel: rezero.1
$region0: #{rezero.1}
  #allocation0 [shape = 'u32[]', space=smem, size = 0x4, offset = 0x4, fixed_abs, tag = 'smem constant byte address 0x4 - core index']
  #allocation1 [shape = 'u32[72,128]{1,0:T(1,128)}', space=vmem, size = 0x9000, scoped, tag = 'internal scratch']
  #allocation2 [shape = 'f32[1]{0:T(128)S(6)}', space=smem, size = 0x200, scoped, tag = 'scoped memory for rezero.1']
  %s0 = inlined_call_operand.<no memory space> [shape: f32[1], index: 0, kind: input, shape index: {}]
  %s1 = inlined_call_operand.vmem [shape: f32[8,256], index: 1, kind: input, shape index: {}]
  %s2 = inlined_call_operand.vmem [shape: f32[8,256], index: 2, kind: output, shape index: {}]
  %s3 = sld [smem:[#allocation0]]
  $region18: #{rezero.1} parent=0
    _
  %s5 = ssub.s32 1, %s3
  %s6 = scalar_select 0, %s5, %s3
  %7 = sst [smem:[#allocation2]] %s0
  // Predicated region
  $region2: #{rezero.1} parent=0 // pred_check
    _
  $region3: #{rezero.1} parent=0 // pred_check_branch
    %9 = sbr.rel (0) target = $region5
  $region4: #{rezero.1} parent=0 // pred_region
    _
  $region5: #{rezero.1} parent=0 // pred_fallthru
    _
  // Predicated region
  $region6: #{rezero.1} parent=0 // pred_check
    _
  $region7: #{rezero.1} parent=0 // pred_check_branch
    %11 = sbr.rel (0) target = $region9
  $region8: #{rezero.1} parent=0 // pred_region
    _
  $region9: #{rezero.1} parent=0 // pred_fallthru
    _
  %v12 = vld [vmem:[%s1] sm:$0xff]
  %v13 = vld [vmem:[%s1 + $0x8] sm:$0xff]
  %v14 = vmul.f32 %v12, %v12
  %v15 = vmul.f32 %v13, %v13
  %v16 = vmul.f32 %v12, %v14
  %v17 = vmul.f32 %v13, %v15
  %v18 = vmul.f32 %v16, 0.044715
  %v19 = vmul.f32 %v17, 0.044715
  %v20 = vadd.f32 %v12, %v18
  %v21 = vadd.f32 %v13, %v19
  %v22 = vmul.f32 %v20, 0.7978846
  %v23 = vmul.f32 %v21, 0.7978846
  %v24 = vtanh.pop %v22
  %v25 = vtanh.pop %v23
  %v26 = vadd.f32 %v24, 1.0
  %v27 = vadd.f32 %v25, 1.0
  %v28 = vmul.f32 %v26, 0.5
  %v29 = vmul.f32 %v27, 0.5
  %v30 = vmul.f32 %v12, %v28
  %v31 = vmul.f32 %v13, %v29
  %s32 = sld [smem:[#allocation2]]
  %v33 = vstv %s32
  %v34 = vmul.f32 %v30, %v33
  %v35 = vmul.f32 %v31, %v33
  %36 = vst [vmem:[%s2] sm:$0xff] %v34
  %37 = vst [vmem:[%s2 + $0x8] sm:$0xff] %v35
  // Predicated region
  $region10: #{rezero.1} parent=0 // pred_check
    _
  $region11: #{rezero.1} parent=0 // pred_check_branch
    %39 = sbr.rel (0) target = $region13
  $region12: #{rezero.1} parent=0 // pred_region
    _
  $region13: #{rezero.1} parent=0 // pred_fallthru
    _
  // Predicated region
  $region14: #{rezero.1} parent=0 // pred_check
    _
  $region15: #{rezero.1} parent=0 // pred_check_branch
    %41 = sbr.rel (0) target = $region17
  $region16: #{rezero.1} parent=0 // pred_region
    _
  $region17: #{rezero.1} parent=0 // pred_fallthru
    _

</llo_original>
